<compile_context>
chip_gen: v6e
topology: v6e:2x2x1
jax: 0.10.0
libtpu: 0.0.40
codegen_flags: <defaults>
</compile_context>

<pallas_src>
import math

import jax
import jax.numpy as jnp
from jax.experimental import pallas as pl
from jax.experimental.pallas import tpu as pltpu

LANES = 128
SUBLANES = 8
MAX_TILE_ROWS = 8192          # 8192 * 128 * 4 B = 4 MiB per f32 input block
GROUP_ROWS = 128              # rows of a tile processed per inner-loop iteration
_NEUTRAL_LOGIT = 30.0         # with target = 1 this gives a focal-loss contribution of ~0


def _round_up(a, b):
    return (a + b - 1) // b * b


def _sublane_multiple(dtype):
    itemsize = jnp.dtype(dtype).itemsize
    return max(8, 32 // itemsize)          # 4B -> 8, 2B -> 16, 1B -> 32


# ================================ kernel ====================================
def _make_focal_loss_kernel(*, alpha, gamma, tile_rows, group_rows):
    """Fused focal-loss partial-sum kernel (hyper-params baked in)."""
    groups = tile_rows // group_rows        # static

    def kernel(x_ref, t_ref, out_ref):
        def body(g, acc):
            r0 = pl.multiple_of(g * group_rows, group_rows)
            x = x_ref[pl.ds(r0, group_rows), :].astype(jnp.float32)
            t = t_ref[pl.ds(r0, group_rows), :].astype(jnp.float32)

            # Numerically stable BCE-with-logits (valid for soft targets too):
            #   bce = max(x, 0) - x*t + log1p(exp(-|x|))
            z = jnp.exp(-jnp.abs(x))                      # EUP
            bce = jnp.maximum(x, 0.0) - x * t + jnp.log1p(z)

            # 1 - pt directly from the shared exp:
            #   p    = where(x>=0, 1, z) / (1+z)
            #   1-pt = where(t==1, 1-p, p) = where((t==1) == (x>=0), z, 1) / (1+z)
            # approx=True keeps the divide on the EUP; use approx=False for strict parity.
            r = pl.reciprocal(1.0 + z, approx=True)       # EUP
            pos = t == 1.0
            nonneg = x >= 0.0
            one_m_pt = jnp.where(pos == nonneg, z, 1.0) * r

            if gamma == 2.0:                              # default: avoid transcendental pow
                focal = one_m_pt * one_m_pt
            elif gamma == 1.0:
                focal = one_m_pt
            elif gamma == 0.0:
                focal = None
            else:
                focal = jnp.power(one_m_pt, gamma)

            af = jnp.where(pos, alpha, 1.0 - alpha)
            loss = af * bce if focal is None else af * focal * bce

            # Pure vreg adds (no XLU): fold the group into the (8, LANES) accumulator.
            return acc + jnp.sum(
                loss.reshape(group_rows // SUBLANES, SUBLANES, LANES), axis=0)

        acc = jax.lax.fori_loop(
            0, groups, body, jnp.zeros((SUBLANES, LANES), jnp.float32))
        out_ref[0] = acc            # per-tile partial sum; reduced once in the wrapper

    return kernel


# ============================ pallas_call driver ============================
def _partial_sums(x2, t2, *, tile_rows, num_tiles, alpha, gamma):
    """Run the kernel over `num_tiles` row-tiles and return the scalar sum."""
    group_rows = math.gcd(tile_rows, GROUP_ROWS)          # multiple of 8, divides tile_rows
    kernel = _make_focal_loss_kernel(
        alpha=float(alpha), gamma=float(gamma),
        tile_rows=tile_rows, group_rows=group_rows)

    partials = pl.pallas_call(
        kernel,
        out_shape=jax.ShapeDtypeStruct((num_tiles, SUBLANES, LANES), jnp.float32),
        grid_spec=pltpu.PrefetchScalarGridSpec(
            num_scalar_prefetch=0,
            grid=(num_tiles,),
            in_specs=[
                pl.BlockSpec((tile_rows, LANES), lambda i: (i, 0)),
                pl.BlockSpec((tile_rows, LANES), lambda i: (i, 0)),
            ],
            # Each tile owns its own (8, 128) partial-sum block -> grid steps are fully
            # independent, so the axis can be "parallel" (shards across v7x's 2 TCs).
            out_specs=pl.BlockSpec((1, SUBLANES, LANES), lambda i: (i, 0, 0)),
        ),
        compiler_params=pltpu.CompilerParams(
            dimension_semantics=("parallel",),
            vmem_limit_bytes=32 * 1024 * 1024,   # 2 inputs x 2 bufs x 4 MiB + headroom
        ),
    )(x2, t2)
    return jnp.sum(partials, dtype=jnp.float32)


def _focal_sum_jnp(x, t, alpha, gamma):
    """Plain-jnp focal-loss *sum* for the (tiny) tail of large unaligned inputs."""
    x = x.astype(jnp.float32)
    t = t.astype(jnp.float32)
    z = jnp.exp(-jnp.abs(x))
    bce = jnp.maximum(x, 0.0) - x * t + jnp.log1p(z)
    p = jax.nn.sigmoid(x)
    pt = jnp.where(t == 1.0, p, 1.0 - p)
    af = jnp.where(t == 1.0, alpha, 1.0 - alpha)
    return jnp.sum(af * (1.0 - pt) ** gamma * bce, dtype=jnp.float32)


# ================================ wrapper ===================================
def focal_loss(logits, targets, alpha=0.25, gamma=2.0):
    """Fused Pallas focal loss. Accepts any matching shapes/dtypes; returns a scalar."""
    assert logits.shape == targets.shape, (logits.shape, targets.shape)
    n = int(logits.size)

    lf = jnp.ravel(logits)                 # free reshape of a contiguous array
    tf = jnp.ravel(targets)
    if not jnp.issubdtype(lf.dtype, jnp.floating):
        lf = lf.astype(jnp.float32)        # rare (int logits); floats pass through natively
    if not jnp.issubdtype(tf.dtype, jnp.floating):
        tf = tf.astype(jnp.float32)        # rare (bool/int targets)

    sub = max(_sublane_multiple(lf.dtype), _sublane_multiple(tf.dtype))
    rows_ceil = -(-n // LANES)

    if rows_ceil <= MAX_TILE_ROWS:
        # Small input: a single lane-dense tile.  If unaligned, pad with *neutral* values
        # (logit=+30, target=1 -> contribution ~0), so no in-kernel mask is needed.
        tile_rows = _round_up(rows_ceil, sub)
        pad = tile_rows * LANES - n
        if pad:
            lf = jnp.concatenate([lf, jnp.full((pad,), _NEUTRAL_LOGIT, lf.dtype)])
            tf = jnp.concatenate([tf, jnp.ones((pad,), tf.dtype)])
        total = _partial_sums(
            lf.reshape(tile_rows, LANES), tf.reshape(tile_rows, LANES),
            tile_rows=tile_rows, num_tiles=1, alpha=alpha, gamma=gamma)
    else:
        # Large input: kernel streams the contiguous bulk (no pad / no O(n) copy when the
        # element count is lane-aligned); the < tile-sized tail is folded in with plain jnp.
        tile_rows = MAX_TILE_ROWS
        rows_full = n // LANES
        num_tiles = rows_full // tile_rows
        n_bulk = num_tiles * tile_rows * LANES
        if n % LANES == 0:
            x2 = lf.reshape(rows_full, LANES)        # free reshape; grid touches only the
            t2 = tf.reshape(rows_full, LANES)        # first num_tiles blocks
        else:
            x2 = lf[: rows_full * LANES].reshape(rows_full, LANES)
            t2 = tf[: rows_full * LANES].reshape(rows_full, LANES)
        total = _partial_sums(x2, t2, tile_rows=tile_rows, num_tiles=num_tiles,
                              alpha=alpha, gamma=gamma)
        if n_bulk < n:
            total = total + _focal_sum_jnp(lf[n_bulk:], tf[n_bulk:], alpha, gamma)

    return total / n


# ========================= pure-JAX reference (check) ========================
def _ref_focal_loss(logits, targets, alpha=0.25, gamma=2.0):
    x = logits.astype(jnp.float32)
    t = targets.astype(jnp.float32)
    p = jax.nn.sigmoid(x)
    bce = jnp.maximum(x, 0.0) - x * t + jnp.log1p(jnp.exp(-jnp.abs(x)))
    pt = jnp.where(t == 1.0, p, 1.0 - p)
    af = jnp.where(t == 1.0, alpha, 1.0 - alpha)
    return jnp.mean(af * (1.0 - pt) ** gamma * bce)


# ================================== main =====================================
if __name__ == "__main__":
    key = jax.random.PRNGKey(0)
    k_logits, k_targets = jax.random.split(key)

    shape = (2, 4, 16, 16)                   # small dense-detection-style shape
    logits = jax.random.normal(k_logits, shape, jnp.float32) * 2.0
    targets = jax.random.bernoulli(k_targets, 0.3, shape).astype(jnp.float32)

    # f32 path
    loss = jax.block_until_ready(focal_loss(logits, targets))
    assert loss.shape == (), loss.shape
    ref = jax.block_until_ready(_ref_focal_loss(logits, targets))
    assert jnp.allclose(loss, ref, rtol=1e-3, atol=1e-3), (float(loss), float(ref))

    # bf16 passthrough path (no wrapper up-cast; kernel casts in-register)
    loss_bf = jax.block_until_ready(
        focal_loss(logits.astype(jnp.bfloat16), targets.astype(jnp.bfloat16)))
    ref_bf = jax.block_until_ready(
        _ref_focal_loss(logits.astype(jnp.bfloat16), targets.astype(jnp.bfloat16)))
    assert jnp.allclose(loss_bf, ref_bf, rtol=1e-2, atol=1e-2), (float(loss_bf), float(ref_bf))

    print("KERNEL_OK")
</pallas_src>

<mosaic_0001>
module attributes {stable_mosaic.version = 11 : i64} {
  func.func @kernel(%arg0: i32, %arg1: memref<16x128xf32, #tpu.memory_space<vmem>>, %arg2: memref<16x128xf32, #tpu.memory_space<vmem>>, %arg3: memref<1x8x128xf32, #tpu.memory_space<vmem>>) attributes {dimension_semantics = [#tpu.dimension_semantics<parallel>], iteration_bounds = array<i64: 1>, scalar_prefetch = 0 : i64, scratch_operands = 0 : i64, tpu.core_type = #tpu.core_type<tc>, window_params = [{transform_indices = @transform_0, window_bounds = array<i64: 16, 128>}, {transform_indices = @transform_1, window_bounds = array<i64: 16, 128>}, {transform_indices = @transform_2, window_bounds = array<i64: 1, 8, 128>}]} {
    %cst = arith.constant 0.000000e+00 : f32
    %0 = vector.broadcast %cst : f32 to vector<8x128xf32>
    %c0_i32 = arith.constant 0 : i32
    %c16_i32 = arith.constant 16 : i32
    %1 = arith.muli %c0_i32, %c16_i32 : i32
    %2 = tpu.assume_multiple %1, 16 : i32
    %3 = arith.index_cast %2 : i32 to index
    %c0 = arith.constant 0 : index
    %4 = vector.load %arg1[%3, %c0] : memref<16x128xf32, #tpu.memory_space<vmem>>, vector<16x128xf32>
    %5 = arith.index_cast %2 : i32 to index
    %c0_0 = arith.constant 0 : index
    %6 = vector.load %arg2[%5, %c0_0] : memref<16x128xf32, #tpu.memory_space<vmem>>, vector<16x128xf32>
    %7 = math.absf %4 : vector<16x128xf32>
    %cst_1 = arith.constant 0.000000e+00 : f32
    %8 = vector.broadcast %cst_1 : f32 to vector<16x128xf32>
    %9 = arith.subf %8, %7 : vector<16x128xf32>
    %10 = math.exp %9 : vector<16x128xf32>
    %cst_2 = arith.constant 0.000000e+00 : f32
    %11 = vector.broadcast %cst_2 : f32 to vector<16x128xf32>
    %12 = arith.maximumf %4, %11 : vector<16x128xf32>
    %13 = arith.mulf %4, %6 : vector<16x128xf32>
    %14 = arith.subf %12, %13 : vector<16x128xf32>
    %15 = math.log1p %10 : vector<16x128xf32>
    %16 = arith.addf %14, %15 : vector<16x128xf32>
    %cst_3 = arith.constant 1.000000e+00 : f32
    %17 = vector.broadcast %cst_3 : f32 to vector<16x128xf32>
    %18 = arith.addf %17, %10 : vector<16x128xf32>
    %19 = tpu.reciprocal %18 {approx = true} : vector<16x128xf32> -> vector<16x128xf32>
    %cst_4 = arith.constant 1.000000e+00 : f32
    %20 = vector.broadcast %cst_4 : f32 to vector<16x128xf32>
    %21 = arith.cmpf oeq, %6, %20 : vector<16x128xf32>
    %cst_5 = arith.constant 0.000000e+00 : f32
    %22 = vector.broadcast %cst_5 : f32 to vector<16x128xf32>
    %23 = arith.cmpf oge, %4, %22 : vector<16x128xf32>
    %24 = arith.xori %21, %23 : vector<16x128xi1>
    %cst_6 = arith.constant dense<true> : vector<16x128xi1>
    %25 = arith.xori %24, %cst_6 : vector<16x128xi1>
    %cst_7 = arith.constant 1.000000e+00 : f32
    %26 = vector.broadcast %cst_7 : f32 to vector<16x128xf32>
    %27 = arith.select %25, %10, %26 : vector<16x128xi1>, vector<16x128xf32>
    %28 = arith.mulf %27, %19 : vector<16x128xf32>
    %29 = arith.mulf %28, %28 : vector<16x128xf32>
    %cst_8 = arith.constant 2.500000e-01 : f32
    %cst_9 = arith.constant 7.500000e-01 : f32
    %30 = vector.broadcast %cst_8 : f32 to vector<16x128xf32>
    %31 = vector.broadcast %cst_9 : f32 to vector<16x128xf32>
    %32 = arith.select %21, %30, %31 : vector<16x128xi1>, vector<16x128xf32>
    %33 = arith.mulf %32, %29 : vector<16x128xf32>
    %34 = arith.mulf %33, %16 : vector<16x128xf32>
    %35 = vector.shape_cast %34 : vector<16x128xf32> to vector<2x8x128xf32>
    %cst_10 = arith.constant dense<0.000000e+00> : vector<8x128xf32>
    %36 = vector.multi_reduction <add>, %35, %cst_10 [0] : vector<2x8x128xf32> to vector<8x128xf32>
    %37 = arith.addf %0, %36 : vector<8x128xf32>
    %c1_i32 = arith.constant 1 : i32
    %c0_11 = arith.constant 0 : index
    %c0_12 = arith.constant 0 : index
    %c0_13 = arith.constant 0 : index
    %38 = vector.load %arg3[%c0_11, %c0_12, %c0_13] : memref<1x8x128xf32, #tpu.memory_space<vmem>>, vector<1x8x128xf32>
    %39 = vector.shape_cast %38 : vector<1x8x128xf32> to vector<8x128xf32>
    %40 = vector.shape_cast %37 : vector<8x128xf32> to vector<1x8x128xf32>
    tpu.vector_store %arg3[%c0_11, %c0_12, %c0_13], %40 {strides = array<i32>} : memref<1x8x128xf32, #tpu.memory_space<vmem>>, vector<1x8x128xf32>,
    return
  }
  func.func @transform_0(%arg0: i32) -> (i32, i32) {
    %c0_i32 = arith.constant 0 : i32
    %c0_i32_0 = arith.constant 0 : i32
    return %arg0, %c0_i32 : i32, i32
  }
  func.func @transform_1(%arg0: i32) -> (i32, i32) {
    %c0_i32 = arith.constant 0 : i32
    %c0_i32_0 = arith.constant 0 : i32
    return %arg0, %c0_i32 : i32, i32
  }
  func.func @transform_2(%arg0: i32) -> (i32, i32, i32) {
    %c0_i32 = arith.constant 0 : i32
    %c0_i32_0 = arith.constant 0 : i32
    %c0_i32_1 = arith.constant 0 : i32
    return %arg0, %c0_i32, %c0_i32_0 : i32, i32, i32
  }
}

</mosaic_0001>

<llo_original>
// kernel: tpu_custom_call.1
$region0: #{tpu_custom_call.1}
  #allocation0 [shape = 'u32[]', space=smem, size = 0x4, offset = 0x4, fixed_abs, tag = 'smem constant byte address 0x4 - core index']
  #allocation1 [shape = 'u32[144,128]{1,0:T(1,128)}', space=vmem, size = 0x12000, scoped, tag = 'internal scratch']
  %s0 = inlined_call_operand.hbm [shape: f32[16,128], index: 0, kind: input, shape index: {}]
  %s1 = inlined_call_operand.hbm [shape: f32[16,128], index: 1, kind: input, shape index: {}]
  %s2 = inlined_call_operand.hbm [shape: f32[1,8,128], index: 2, kind: output, shape index: {}]
  %s3 = sld [smem:[#allocation0]]
  $region26: #{tpu_custom_call.1} parent=0
    _
  %s5 = ssub.s32 1, %s3
  %s6 = scalar_select 0, %s5, %s3
  $region1: #{tpu_custom_call.1} parent=0
    #allocation2 [shape = 'u8[8192]{0}', space=vmem, size = 0x2000, scoped, tag = 'input window, operand 0, single buffered']
    #allocation3 [shape = 's32[1]{0}', space=sflag, size = 0x4, scoped, tag = 'scoped memory for tpu_custom_call.1']
    #allocation4 [shape = 's32[1]{0}', space=sflag, size = 0x4, scoped, tag = 'scoped memory for tpu_custom_call.1']
    #allocation5 [shape = 'u8[8192]{0}', space=vmem, size = 0x2000, scoped, tag = 'input window, operand 1, single buffered']
    #allocation6 [shape = 's32[1]{0}', space=sflag, size = 0x4, scoped, tag = 'scoped memory for tpu_custom_call.1']
    #allocation7 [shape = 'u8[4096]{0}', space=vmem, size = 0x1000, scoped, tag = 'output window, operand 0, single buffered']
    %7 = vsyncpa [#allocation3], 0
    %8 = vsyncpa [#allocation6], 0
    %9 = vsyncpa [#allocation4], 0
    // Predicated region
    $region2: #{tpu_custom_call.1} parent=1 // pred_check
      _
    $region3: #{tpu_custom_call.1} parent=1 // pred_check_branch
      %11 = sbr.rel (0) target = $region5
    $region4: #{tpu_custom_call.1} parent=1 // pred_region
      %s13 = ssub.s32 256, 256
      %14 = vsyncadd [#allocation3], %s13
      %s15 = sshll.u32 [#allocation2], 4
      %s16 = int_to_ptr.vmem [resolvable:$true] %s15
      %21 = dma.hbm_to_vmem [thread:$0]  %s0, 256, %s16, [#allocation3], 128, 128, 8
    $region5: #{tpu_custom_call.1} parent=1 // pred_fallthru
      _
    // Predicated region
    $region6: #{tpu_custom_call.1} parent=1 // pred_check
      _
    $region7: #{tpu_custom_call.1} parent=1 // pred_check_branch
      %23 = sbr.rel (0) target = $region9
    $region8: #{tpu_custom_call.1} parent=1 // pred_region
      %s25 = ssub.s32 256, 256
      %26 = vsyncadd [#allocation6], %s25
      %s27 = sshll.u32 [#allocation5], 4
      %s28 = int_to_ptr.vmem [resolvable:$true] %s27
      %33 = dma.hbm_to_vmem [thread:$0]  %s1, 256, %s28, [#allocation6], 128, 128, 8
    $region9: #{tpu_custom_call.1} parent=1 // pred_fallthru
      _
    // Predicated region
    $region10: #{tpu_custom_call.1} parent=1 // pred_check
      _
    $region11: #{tpu_custom_call.1} parent=1 // pred_check_branch
      %35 = sbr.rel (0) target = $region13
    $region12: #{tpu_custom_call.1} parent=1 // pred_region
      %36 = dma.done [#allocation3], 256
    $region13: #{tpu_custom_call.1} parent=1 // pred_fallthru
      _
    // Predicated region
    $region14: #{tpu_custom_call.1} parent=1 // pred_check
      _
    $region15: #{tpu_custom_call.1} parent=1 // pred_check_branch
      %38 = sbr.rel (0) target = $region17
    $region16: #{tpu_custom_call.1} parent=1 // pred_region
      %39 = dma.done [#allocation6], 256
    $region17: #{tpu_custom_call.1} parent=1 // pred_fallthru
      _
    %v40 = vld [vmem:[#allocation2] sm:$0xff]
    %v41 = vld [vmem:[#allocation2 + $0x8] sm:$0xff]
    %v42 = vld [vmem:[#allocation5] sm:$0xff]
    %v43 = vld [vmem:[#allocation5 + $0x8] sm:$0xff]
    %v44 = vand.u32 2147483647, %v40
    %v45 = vand.u32 2147483647, %v41
    %v46 = vsub.f32 0.0, %v44
    %v47 = vsub.f32 0.0, %v45
    %v48 = vmul.f32 %v46, 1.442695
    %v49 = vpow.pop %v48
    %v50 = vmul.f32 %v47, 1.442695
    %v51 = vpow.pop %v50
    %v52 = vmax.f32 %v40, 0.0
    %v53 = vmax.f32 %v41, 0.0
    %v54 = vmul.f32 %v40, %v42
    %v55 = vmul.f32 %v41, %v43
    %v56 = vsub.f32 %v52, %v54
    %v57 = vsub.f32 %v53, %v55
    %v58 = vadd.f32 %v49, 1.0
    %v59 = vlog2.pop %v58
    %v60 = vmul.f32 %v59, 0.6931472
    %v61 = vmul.f32 -0.5, %v49
    %v62 = vadd.f32 %v61, 1.0
    %v63 = vmul.f32 %v62, %v49
    %v64 = vand.u32 2147483647, %v49
    %vm65 = vcmp.lt.f32.partialorder %v64, 0.0004427343
    %v66 = vsel %vm65, %v63, %v60
    %v67 = vadd.f32 %v51, 1.0
    %v68 = vlog2.pop %v67
    %v69 = vmul.f32 %v68, 0.6931472
    %v70 = vmul.f32 -0.5, %v51
    %v71 = vadd.f32 %v70, 1.0
    %v72 = vmul.f32 %v71, %v51
    %v73 = vand.u32 2147483647, %v51
    %vm74 = vcmp.lt.f32.partialorder %v73, 0.0004427343
    %v75 = vsel %vm74, %v72, %v69
    %v76 = vadd.f32 %v56, %v66
    %v77 = vadd.f32 %v57, %v75
    %v78 = vadd.f32 %v49, 1.0
    %v79 = vadd.f32 %v51, 1.0
    %v80 = vrcp.pop %v78
    %v81 = vrcp.pop %v79
    %vm82 = vcmp.eq.f32.partialorder %v42, 1.0
    %vm83 = vcmp.eq.f32.partialorder %v43, 1.0
    %vm84 = vcmp.ge.f32.partialorder %v40, 0.0
    %vm85 = vcmp.ge.f32.partialorder %v41, 0.0
    %vm86 = vmxor %vm82, %vm84
    %vm87 = vmxor %vm83, %vm85
    %vm88 = vmxor %vm86, 1
    %vm89 = vmxor %vm87, 1
    %v90 = vsel %vm88, %v49, 1.0
    %v91 = vsel %vm89, %v51, 1.0
    %v92 = vmul.f32 %v90, %v80
    %v93 = vmul.f32 %v91, %v81
    %v94 = vmul.f32 %v92, %v92
    %v95 = vmul.f32 %v93, %v93
    %v96 = vsel %vm82, 0.25, 0.75
    %v97 = vsel %vm83, 0.25, 0.75
    %v98 = vmul.f32 %v96, %v94
    %v99 = vmul.f32 %v97, %v95
    %v100 = vmul.f32 %v98, %v76
    %v101 = vmul.f32 %v99, %v77
    %v102 = vadd.f32 %v100, %v101
    %v103 = vadd.f32 %v102, 0.0
    %104 = vst [vmem:[#allocation7] sm:$0xff] %v103
    // Predicated region
    $region18: #{tpu_custom_call.1} parent=1 // pred_check
      _
    $region19: #{tpu_custom_call.1} parent=1 // pred_check_branch
      %106 = sbr.rel (0) target = $region21
    $region20: #{tpu_custom_call.1} parent=1 // pred_region
      %s108 = ssub.s32 128, 128
      %109 = vsyncadd [#allocation4], %s108
      %s111 = sshll.u32 [#allocation7], 4
      %s112 = int_to_ptr.vmem [resolvable:$true] %s111
      %114 = dma.vmem_to_hbm [thread:$0]  %s112, 128, %s2, [#allocation4]
    $region21: #{tpu_custom_call.1} parent=1 // pred_fallthru
      _
    // Predicated region
    $region22: #{tpu_custom_call.1} parent=1 // pred_check
      _
    $region23: #{tpu_custom_call.1} parent=1 // pred_check_branch
      %116 = sbr.rel (0) target = $region25
    $region24: #{tpu_custom_call.1} parent=1 // pred_region
      %117 = dma.done [#allocation4], 128
    $region25: #{tpu_custom_call.1} parent=1 // pred_fallthru
      _
    %118 = vsyncpa [#allocation3], 1
    %119 = vsyncpa [#allocation6], 1
    %120 = vsyncpa [#allocation4], 1

</llo_original>
